<compile_context>
chip_gen: v7x
topology: tpu7x:2x2x1
jax: 0.10.0
libtpu: 0.0.40
codegen_flags: <defaults>
</compile_context>

<pallas_src>
import functools

import jax
import jax.numpy as jnp
from jax.experimental import pallas as pl
from jax.experimental.pallas import tpu as pltpu


# ----------------------------- Pallas kernel --------------------------------


def _layernorm(v, gamma, beta, eps=1e-5):
    # single-pass variance: one fewer full (R, E) subtract+square VPU pass
    mu = jnp.mean(v, axis=-1, keepdims=True)
    var = jnp.mean(v * v, axis=-1, keepdims=True) - mu * mu
    return (v - mu) * jax.lax.rsqrt(var + eps) * gamma + beta


def _transformer_block_kernel(
    x_ref,        # (R, E)  R = block_batch * seq_len, flattened rows
    wattn_ref,    # (E, E)  fused V->O projection: blockdiag(wv^T) @ wo^T
    w1_ref,       # (E, F)  FFN-1 weight, transposed
    w2_ref,       # (F, E)  FFN-2 weight, transposed
    vec_ref,      # (8, E)  packed rows: b_attn, g1, be1, g2, be2, bb2, pad, pad
    bb1_ref,      # (1, F)  FFN-1 bias
    out_ref,      # (R, E)
    *, seq_len, block_batch,
):
    f32 = jnp.float32
    BB, S = block_batch, seq_len
    x = x_ref[...]                       # keep input dtype; MXU accumulates in f32
    R, E = x.shape
    cdt = wattn_ref.dtype                # matmul operand dtype (f32 or bf16)

    vec = vec_ref[...].astype(f32)
    b_attn = vec[0:1]
    g1, be1 = vec[1:2], vec[2:3]
    g2, be2 = vec[3:4], vec[4:5]
    bb2 = vec[5:6]

    # ---- self-attention, algebraically collapsed (see module notes) --------
    # per-batch sum over sequence positions: sublane reduction (XLU/VPU), not MXU
    x3 = x.astype(f32).reshape(BB, S, E)            # (BB, S, E)
    xsum = jnp.sum(x3, axis=1)                      # (BB, E)
    attn = jnp.dot(xsum.astype(cdt), wattn_ref[...],
                   preferred_element_type=f32) + b_attn          # (BB, E)
    # broadcast each batch element's attention row over its S query positions,
    # add the residual (== `values` argument in PyTorch), then layernorm
    x1 = _layernorm((x3 + attn[:, None, :]).reshape(R, E), g1, be1)

    # ---- feed-forward -------------------------------------------------------
    h = jnp.maximum(
        jnp.dot(x1.astype(cdt), w1_ref[...], preferred_element_type=f32)
        + bb1_ref[...].astype(f32),
        0.0)                                                      # (R, F)
    ff = jnp.dot(h.astype(cdt), w2_ref[...], preferred_element_type=f32) + bb2
    out = _layernorm(ff + x1, g2, be2)

    out_ref[...] = out.astype(out_ref.dtype)


# ------------------------- one-time parameter prep ---------------------------


def prepare_block_params(params, *, num_heads, seq_len, weight_dtype=jnp.float32):
    """Per-layer weight prep, done ONCE outside the hot per-call path."""
    E = params["wo"].shape[0]
    H = num_heads
    wv_bd_t = jax.scipy.linalg.block_diag(*([params["wv"].T] * H))    # (E, E)
    wo_t = params["wo"].T                                             # (E, E)
    # fold the (mostly-zero block-diagonal) V projection into fc_out:
    w_attn = (wv_bd_t @ wo_t).astype(weight_dtype)                    # (E, E)
    v_bias = jnp.tile(params["bv"][0], H) * float(seq_len)            # sum over S
    b_attn = v_bias @ wo_t + params["bo"][0]                          # (E,)
    zeros = jnp.zeros((E,), jnp.float32)
    vec = jnp.stack(
        [b_attn, params["g1"][0], params["be1"][0],
         params["g2"][0], params["be2"][0], params["bb2"][0],
         zeros, zeros], axis=0).astype(jnp.float32)                   # (8, E)
    return dict(
        w_attn=w_attn,
        w1_t=params["w1"].T.astype(weight_dtype),                     # (E, F)
        w2_t=params["w2"].T.astype(weight_dtype),                     # (F, E)
        vec=vec,
        bb1=params["bb1"].astype(jnp.float32),                        # (1, F)
    )


# ------------------------------- wrapper --------------------------------------


def transformer_block_pallas(x, prep, *, block_batch=None, vmem_cap_bytes=64 << 20):
    B, S, E = x.shape
    F = prep["w1_t"].shape[1]
    w_itemsize = jnp.dtype(prep["w1_t"].dtype).itemsize
    x_itemsize = jnp.dtype(x.dtype).itemsize

    # ---- pick block_batch: >=2 grid steps (megacore on v7x + pipelining),
    #      ~512-row tiles, bounded by a VMEM budget (v7x has only 64 MiB) ----
    weight_bytes = (E * E + 2 * E * F) * w_itemsize + (8 * E + F) * 4
    if block_batch is None:
        budget = vmem_cap_bytes - 2 * weight_bytes - (4 << 20)
        per_row = 4 * E * x_itemsize + 4 * (2 * E + F)   # dbl-buffered io + f32 temps
        rows_cap = max(S, budget // max(per_row, 1))
        block_batch = max(1, min(B, max(1, 512 // S), rows_cap // S))
        if B >= 2:
            block_batch = min(block_batch, B // 2)       # at least 2 grid steps
    block_batch = max(1, block_batch)
    while B % block_batch:
        block_batch -= 1
    if block_batch < B and (block_batch * S) % 8:
        block_batch = B            # full-rows block is always layout-legal
    grid = (B // block_batch,)
    R = block_batch * S

    x2 = x.reshape(B * S, E)
    kernel = functools.partial(
        _transformer_block_kernel, seq_len=S, block_batch=block_batch)

    flops = 2 * B * E * E + 4 * B * S * E * F
    bytes_accessed = weight_bytes + 2 * B * S * E * x_itemsize
    vmem_limit = int(min(max(32 << 20, 4 * bytes_accessed), vmem_cap_bytes))

    out = pl.pallas_call(
        kernel,
        out_shape=jax.ShapeDtypeStruct((B * S, E), x.dtype),
        grid=grid,
        in_specs=[
            pl.BlockSpec((R, E), lambda b: (b, 0)),      # activations (pipelined)
            # grid-invariant weights; for large E also single-buffer these
            # (pipeline_mode=pl.Buffered(1)) to halve their VMEM footprint.
            pl.BlockSpec((E, E), lambda b: (0, 0)),      # fused V->O projection
            pl.BlockSpec((E, F), lambda b: (0, 0)),      # FFN-1
            pl.BlockSpec((F, E), lambda b: (0, 0)),      # FFN-2
            pl.BlockSpec((8, E), lambda b: (0, 0)),      # packed bias/gamma/beta
            pl.BlockSpec((1, F), lambda b: (0, 0)),      # FFN-1 bias
        ],
        out_specs=pl.BlockSpec((R, E), lambda b: (b, 0)),
        compiler_params=pltpu.CompilerParams(
            dimension_semantics=("parallel",),           # row-tile axis -> both TCs on v7x
            vmem_limit_bytes=vmem_limit),
        cost_estimate=pl.CostEstimate(
            flops=flops, transcendentals=0, bytes_accessed=bytes_accessed),
    )(x2, prep["w_attn"], prep["w1_t"], prep["w2_t"], prep["vec"], prep["bb1"])
    return out.reshape(B, S, E)


# --------------------------- parameter creation ------------------------------


def init_encoder_params(key, *, vocab, embed, num_layers, num_heads, ffexp, max_len):
    head_dims = embed // num_heads
    keys = jax.random.split(key, 2 + num_layers)
    word_emb = jax.random.normal(keys[0], (vocab, embed), jnp.float32)
    pos_emb = jax.random.normal(keys[1], (max_len, embed), jnp.float32)

    def linear(k, fan_in, fan_out):
        bound = 1.0 / (fan_in ** 0.5)
        kw, kb = jax.random.split(k)
        w = jax.random.uniform(kw, (fan_out, fan_in), jnp.float32, -bound, bound)
        b = jax.random.uniform(kb, (1, fan_out), jnp.float32, -bound, bound)
        return w, b

    layers = []
    for i in range(num_layers):
        lk = jax.random.split(keys[2 + i], 6)
        wk, bk = linear(lk[0], head_dims, head_dims)
        wq, bq = linear(lk[1], head_dims, head_dims)
        wv, bv = linear(lk[2], head_dims, head_dims)
        wo, bo = linear(lk[3], embed, embed)
        w1, bb1 = linear(lk[4], embed, embed * ffexp)
        w2, bb2 = linear(lk[5], embed * ffexp, embed)
        layers.append(dict(
            wk=wk, bk=bk, wq=wq, bq=bq, wv=wv, bv=bv, wo=wo, bo=bo,
            g1=jnp.ones((1, embed), jnp.float32), be1=jnp.zeros((1, embed), jnp.float32),
            g2=jnp.ones((1, embed), jnp.float32), be2=jnp.zeros((1, embed), jnp.float32),
            w1=w1, bb1=bb1, w2=w2, bb2=bb2,
        ))
    return word_emb, pos_emb, layers


# ------------------------------ Encoder forward -------------------------------


def encoder_forward(x_ids, word_emb, pos_emb, prepared_layers):
    B, S = x_ids.shape
    out = word_emb[x_ids] + pos_emb[jnp.arange(S)][None, :, :]   # embedding glue (plain JAX)
    # TODO(synk): fold the layer loop into one pallas_call (grid axis over layers,
    #             weights indexed by layer) to avoid per-layer HBM round trips.
    for prep in prepared_layers:
        out = transformer_block_pallas(out, prep)
    return out


# Pure-JAX reference mirroring the PyTorch module exactly (full Q/K projections,
# energy matmul and softmax, incl. the quirky 'nhqk,nvhd->nqhd' einsum labels).
def encoder_reference(x_ids, word_emb, pos_emb, layers, *, num_heads, embed):
    head_dims = embed // num_heads
    B, S = x_ids.shape
    out = word_emb[x_ids] + pos_emb[jnp.arange(S)][None, :, :]
    for p in layers:
        x = out
        xh = x.reshape(B, S, num_heads, head_dims)
        q = xh @ p["wq"].T + p["bq"][0]
        k = xh @ p["wk"].T + p["bk"][0]
        v = xh @ p["wv"].T + p["bv"][0]
        energy = jnp.einsum('nqhd,nkhd->nhqk', q, k)
        attn = jax.nn.softmax(energy / (embed ** 0.5), axis=3)
        o = jnp.einsum('nhqk,nvhd->nqhd', attn, v).reshape(B, S, embed)
        o = o @ p["wo"].T + p["bo"][0]
        x1 = _layernorm(o + x, p["g1"][0], p["be1"][0])
        h1 = jax.nn.relu(x1 @ p["w1"].T + p["bb1"][0])
        ff = h1 @ p["w2"].T + p["bb2"][0]
        out = _layernorm(ff + x1, p["g2"][0], p["be2"][0])
    return out


if __name__ == "__main__":
    VOCAB = 50
    EMBED = 32
    NUM_LAYERS = 2
    NUM_HEADS = 4
    FF_EXPANSION = 2
    MAX_LEN = 16
    B, S = 2, 8

    key = jax.random.PRNGKey(0)
    kp, kx = jax.random.split(key)
    word_emb, pos_emb, layers = init_encoder_params(
        kp, vocab=VOCAB, embed=EMBED, num_layers=NUM_LAYERS,
        num_heads=NUM_HEADS, ffexp=FF_EXPANSION, max_len=MAX_LEN)

    x_ids = jax.random.randint(kx, (B, S), 0, VOCAB, dtype=jnp.int32)

    # One-time weight prep (folded V->O projection, packed vectors), hoisted
    # out of the per-layer / per-call hot path.
    prepared = [prepare_block_params(p, num_heads=NUM_HEADS, seq_len=S)
                for p in layers]

    out = encoder_forward(x_ids, word_emb, pos_emb, prepared)
    out = jax.block_until_ready(out)

    ref = encoder_reference(x_ids, word_emb, pos_emb, layers,
                            num_heads=NUM_HEADS, embed=EMBED)
    assert out.shape == (B, S, EMBED)
    assert jnp.allclose(out, ref, rtol=2e-3, atol=2e-3), "mismatch vs reference"

    print("KERNEL_OK")
</pallas_src>

<mosaic_0001>
module attributes {stable_mosaic.version = 11 : i64} {
  func.func @_transformer_block_kernel(%arg0: i32, %arg1: memref<8x32xf32, #tpu.memory_space<vmem>>, %arg2: memref<32x32xf32, #tpu.memory_space<vmem>>, %arg3: memref<32x64xf32, #tpu.memory_space<vmem>>, %arg4: memref<64x32xf32, #tpu.memory_space<vmem>>, %arg5: memref<8x32xf32, #tpu.memory_space<vmem>>, %arg6: memref<1x64xf32, #tpu.memory_space<vmem>>, %arg7: memref<8x32xf32, #tpu.memory_space<vmem>>) attributes {dimension_semantics = [#tpu.dimension_semantics<parallel>], iteration_bounds = array<i64: 2>, scalar_prefetch = 0 : i64, scratch_operands = 0 : i64, tpu.core_type = #tpu.core_type<tc>, window_params = [{transform_indices = @transform_0, window_bounds = array<i64: 8, 32>}, {pipeline_mode = #tpu.pipeline_mode<synchronous>, transform_indices = @transform_1, window_bounds = array<i64: 32, 32>}, {pipeline_mode = #tpu.pipeline_mode<synchronous>, transform_indices = @transform_2, window_bounds = array<i64: 32, 64>}, {pipeline_mode = #tpu.pipeline_mode<synchronous>, transform_indices = @transform_3, window_bounds = array<i64: 64, 32>}, {pipeline_mode = #tpu.pipeline_mode<synchronous>, transform_indices = @transform_4, window_bounds = array<i64: 8, 32>}, {pipeline_mode = #tpu.pipeline_mode<synchronous>, transform_indices = @transform_5, window_bounds = array<i64: 1, 64>}, {transform_indices = @transform_6, window_bounds = array<i64: 8, 32>}]} {
    %c0 = arith.constant 0 : index
    %c0_0 = arith.constant 0 : index
    %0 = vector.load %arg1[%c0, %c0_0] : memref<8x32xf32, #tpu.memory_space<vmem>>, vector<8x32xf32>
    %c0_1 = arith.constant 0 : index
    %c0_2 = arith.constant 0 : index
    %1 = vector.load %arg5[%c0_1, %c0_2] : memref<8x32xf32, #tpu.memory_space<vmem>>, vector<8x32xf32>
    %2 = vector.extract_strided_slice %1 {offsets = [0, 0], sizes = [1, 32], strides = [1, 1]} : vector<8x32xf32> to vector<1x32xf32>
    %3 = vector.extract_strided_slice %1 {offsets = [1, 0], sizes = [1, 32], strides = [1, 1]} : vector<8x32xf32> to vector<1x32xf32>
    %4 = vector.extract_strided_slice %1 {offsets = [2, 0], sizes = [1, 32], strides = [1, 1]} : vector<8x32xf32> to vector<1x32xf32>
    %5 = vector.extract_strided_slice %1 {offsets = [3, 0], sizes = [1, 32], strides = [1, 1]} : vector<8x32xf32> to vector<1x32xf32>
    %6 = vector.extract_strided_slice %1 {offsets = [4, 0], sizes = [1, 32], strides = [1, 1]} : vector<8x32xf32> to vector<1x32xf32>
    %7 = vector.extract_strided_slice %1 {offsets = [5, 0], sizes = [1, 32], strides = [1, 1]} : vector<8x32xf32> to vector<1x32xf32>
    %8 = vector.shape_cast %0 : vector<8x32xf32> to vector<1x8x32xf32>
    %cst = arith.constant dense<0.000000e+00> : vector<1x32xf32>
    %9 = vector.multi_reduction <add>, %8, %cst [1] : vector<1x8x32xf32> to vector<1x32xf32>
    %c0_3 = arith.constant 0 : index
    %c0_4 = arith.constant 0 : index
    %10 = vector.load %arg2[%c0_3, %c0_4] : memref<32x32xf32, #tpu.memory_space<vmem>>, vector<32x32xf32>
    %cst_5 = arith.constant dense<0.000000e+00> : vector<1x32xf32>
    %11 = tpu.matmul %9, %10, %cst_5 {dimension_numbers = #tpu.dot_dimension_numbers<[1], [0], [0], [1], [0, 0, 1, 1], [], []>} : vector<1x32xf32>, vector<32x32xf32>, vector<1x32xf32> -> vector<1x32xf32>
    %12 = arith.addf %11, %2 : vector<1x32xf32>
    %13 = vector.shape_cast %12 : vector<1x32xf32> to vector<1x1x32xf32>
    %14 = vector.broadcast %13 : vector<1x1x32xf32> to vector<1x8x32xf32>
    %15 = arith.addf %8, %14 : vector<1x8x32xf32>
    %16 = vector.shape_cast %15 : vector<1x8x32xf32> to vector<8x32xf32>
    %cst_6 = arith.constant dense<0.000000e+00> : vector<8xf32>
    %17 = vector.multi_reduction <add>, %16, %cst_6 [1] : vector<8x32xf32> to vector<8xf32>
    %18 = vector.shape_cast %17 : vector<8xf32> to vector<8x1xf32>
    %cst_7 = arith.constant 3.200000e+01 : f32
    %19 = vector.broadcast %cst_7 : f32 to vector<8x1xf32>
    %20 = arith.divf %18, %19 : vector<8x1xf32>
    %21 = arith.mulf %16, %16 : vector<8x32xf32>
    %cst_8 = arith.constant dense<0.000000e+00> : vector<8xf32>
    %22 = vector.multi_reduction <add>, %21, %cst_8 [1] : vector<8x32xf32> to vector<8xf32>
    %23 = vector.shape_cast %22 : vector<8xf32> to vector<8x1xf32>
    %cst_9 = arith.constant 3.200000e+01 : f32
    %24 = vector.broadcast %cst_9 : f32 to vector<8x1xf32>
    %25 = arith.divf %23, %24 : vector<8x1xf32>
    %26 = arith.mulf %20, %20 : vector<8x1xf32>
    %27 = arith.subf %25, %26 : vector<8x1xf32>
    %28 = vector.broadcast %20 : vector<8x1xf32> to vector<8x32xf32>
    %29 = arith.subf %16, %28 : vector<8x32xf32>
    %cst_10 = arith.constant 9.99999974E-6 : f32
    %30 = vector.broadcast %cst_10 : f32 to vector<8x1xf32>
    %31 = arith.addf %27, %30 : vector<8x1xf32>
    %32 = math.rsqrt %31 : vector<8x1xf32>
    %33 = vector.broadcast %32 : vector<8x1xf32> to vector<8x32xf32>
    %34 = arith.mulf %29, %33 : vector<8x32xf32>
    %35 = vector.broadcast %3 : vector<1x32xf32> to vector<8x32xf32>
    %36 = arith.mulf %34, %35 : vector<8x32xf32>
    %37 = vector.broadcast %4 : vector<1x32xf32> to vector<8x32xf32>
    %38 = arith.addf %36, %37 : vector<8x32xf32>
    %c0_11 = arith.constant 0 : index
    %c0_12 = arith.constant 0 : index
    %39 = vector.load %arg3[%c0_11, %c0_12] : memref<32x64xf32, #tpu.memory_space<vmem>>, vector<32x64xf32>
    %cst_13 = arith.constant dense<0.000000e+00> : vector<8x64xf32>
    %40 = tpu.matmul %38, %39, %cst_13 {dimension_numbers = #tpu.dot_dimension_numbers<[1], [0], [0], [1], [0, 0, 1, 1], [], []>} : vector<8x32xf32>, vector<32x64xf32>, vector<8x64xf32> -> vector<8x64xf32>
    %c0_14 = arith.constant 0 : index
    %c0_15 = arith.constant 0 : index
    %41 = vector.load %arg6[%c0_14, %c0_15] : memref<1x64xf32, #tpu.memory_space<vmem>>, vector<1x64xf32>
    %42 = vector.broadcast %41 : vector<1x64xf32> to vector<8x64xf32>
    %43 = arith.addf %40, %42 : vector<8x64xf32>
    %cst_16 = arith.constant 0.000000e+00 : f32
    %44 = vector.broadcast %cst_16 : f32 to vector<8x64xf32>
    %45 = arith.maximumf %43, %44 : vector<8x64xf32>
    %c0_17 = arith.constant 0 : index
    %c0_18 = arith.constant 0 : index
    %46 = vector.load %arg4[%c0_17, %c0_18] : memref<64x32xf32, #tpu.memory_space<vmem>>, vector<64x32xf32>
    %cst_19 = arith.constant dense<0.000000e+00> : vector<8x32xf32>
    %47 = tpu.matmul %45, %46, %cst_19 {dimension_numbers = #tpu.dot_dimension_numbers<[1], [0], [0], [1], [0, 0, 1, 1], [], []>} : vector<8x64xf32>, vector<64x32xf32>, vector<8x32xf32> -> vector<8x32xf32>
    %48 = vector.broadcast %7 : vector<1x32xf32> to vector<8x32xf32>
    %49 = arith.addf %47, %48 : vector<8x32xf32>
    %50 = arith.addf %49, %38 : vector<8x32xf32>
    %cst_20 = arith.constant dense<0.000000e+00> : vector<8xf32>
    %51 = vector.multi_reduction <add>, %50, %cst_20 [1] : vector<8x32xf32> to vector<8xf32>
    %52 = vector.shape_cast %51 : vector<8xf32> to vector<8x1xf32>
    %cst_21 = arith.constant 3.200000e+01 : f32
    %53 = vector.broadcast %cst_21 : f32 to vector<8x1xf32>
    %54 = arith.divf %52, %53 : vector<8x1xf32>
    %55 = arith.mulf %50, %50 : vector<8x32xf32>
    %cst_22 = arith.constant dense<0.000000e+00> : vector<8xf32>
    %56 = vector.multi_reduction <add>, %55, %cst_22 [1] : vector<8x32xf32> to vector<8xf32>
    %57 = vector.shape_cast %56 : vector<8xf32> to vector<8x1xf32>
    %cst_23 = arith.constant 3.200000e+01 : f32
    %58 = vector.broadcast %cst_23 : f32 to vector<8x1xf32>
    %59 = arith.divf %57, %58 : vector<8x1xf32>
    %60 = arith.mulf %54, %54 : vector<8x1xf32>
    %61 = arith.subf %59, %60 : vector<8x1xf32>
    %62 = vector.broadcast %54 : vector<8x1xf32> to vector<8x32xf32>
    %63 = arith.subf %50, %62 : vector<8x32xf32>
    %cst_24 = arith.constant 9.99999974E-6 : f32
    %64 = vector.broadcast %cst_24 : f32 to vector<8x1xf32>
    %65 = arith.addf %61, %64 : vector<8x1xf32>
    %66 = math.rsqrt %65 : vector<8x1xf32>
    %67 = vector.broadcast %66 : vector<8x1xf32> to vector<8x32xf32>
    %68 = arith.mulf %63, %67 : vector<8x32xf32>
    %69 = vector.broadcast %5 : vector<1x32xf32> to vector<8x32xf32>
    %70 = arith.mulf %68, %69 : vector<8x32xf32>
    %71 = vector.broadcast %6 : vector<1x32xf32> to vector<8x32xf32>
    %72 = arith.addf %70, %71 : vector<8x32xf32>
    %c0_25 = arith.constant 0 : index
    %c0_26 = arith.constant 0 : index
    %73 = vector.load %arg7[%c0_25, %c0_26] : memref<8x32xf32, #tpu.memory_space<vmem>>, vector<8x32xf32>
    tpu.vector_store %arg7[%c0_25, %c0_26], %72 {strides = array<i32>} : memref<8x32xf32, #tpu.memory_space<vmem>>, vector<8x32xf32>,
    return
  }
  func.func @transform_0(%arg0: i32) -> (i32, i32) {
    %c0_i32 = arith.constant 0 : i32
    %c0_i32_0 = arith.constant 0 : i32
    return %arg0, %c0_i32 : i32, i32
  }
  func.func @transform_1(%arg0: i32) -> (i32, i32) {
    %c0_i32 = arith.constant 0 : i32
    %c0_i32_0 = arith.constant 0 : i32
    %c0_i32_1 = arith.constant 0 : i32
    return %c0_i32, %c0_i32_0 : i32, i32
  }
  func.func @transform_2(%arg0: i32) -> (i32, i32) {
    %c0_i32 = arith.constant 0 : i32
    %c0_i32_0 = arith.constant 0 : i32
    %c0_i32_1 = arith.constant 0 : i32
    return %c0_i32, %c0_i32_0 : i32, i32
  }
  func.func @transform_3(%arg0: i32) -> (i32, i32) {
    %c0_i32 = arith.constant 0 : i32
    %c0_i32_0 = arith.constant 0 : i32
    %c0_i32_1 = arith.constant 0 : i32
    return %c0_i32, %c0_i32_0 : i32, i32
  }
  func.func @transform_4(%arg0: i32) -> (i32, i32) {
    %c0_i32 = arith.constant 0 : i32
    %c0_i32_0 = arith.constant 0 : i32
    %c0_i32_1 = arith.constant 0 : i32
    return %c0_i32, %c0_i32_0 : i32, i32
  }
  func.func @transform_5(%arg0: i32) -> (i32, i32) {
    %c0_i32 = arith.constant 0 : i32
    %c0_i32_0 = arith.constant 0 : i32
    %c0_i32_1 = arith.constant 0 : i32
    return %c0_i32, %c0_i32_0 : i32, i32
  }
  func.func @transform_6(%arg0: i32) -> (i32, i32) {
    %c0_i32 = arith.constant 0 : i32
    %c0_i32_0 = arith.constant 0 : i32
    return %arg0, %c0_i32 : i32, i32
  }
}

</mosaic_0001>

<llo_original>
// kernel: tpu_custom_call.1
$region0: #{tpu_custom_call.1}
  #allocation0 [shape = 'u32[]', space=smem, size = 0x4, offset = 0x4, fixed_abs, tag = 'smem constant byte address 0x4 - core index']
  #allocation1 [shape = 'u32[144,128]{1,0:T(1,128)}', space=vmem, size = 0x12000, scoped, tag = 'internal scratch']
  %s0 = inlined_call_operand.vmem [shape: f32[16,32], index: 0, kind: input, shape index: {}]
  %s1 = inlined_call_operand.vmem [shape: f32[32,32], index: 1, kind: input, shape index: {}]
  %s2 = inlined_call_operand.vmem [shape: f32[32,64], index: 2, kind: input, shape index: {}]
  %s3 = inlined_call_operand.vmem [shape: f32[64,32], index: 3, kind: input, shape index: {}]
  %s4 = inlined_call_operand.vmem [shape: f32[8,32], index: 4, kind: input, shape index: {}]
  %s5 = inlined_call_operand.vmem [shape: f32[1,64], index: 5, kind: input, shape index: {}]
  %s6 = inlined_call_operand.hbm [shape: f32[16,32], index: 6, kind: output, shape index: {}]
  %s7 = sld [smem:[#allocation0]]
  $region57: #{tpu_custom_call.1} parent=0
    _
  %s9 = ssub.s32 1, %s7
  %s10 = scalar_select 0, %s9, %s7
  $region1: #{tpu_custom_call.1} parent=0
    #allocation2 [shape = 'u8[8192]{0}', space=vmem, size = 0x2000, scoped, tag = 'output window, operand 0']
    #allocation3 [shape = 's32[2]{0}', space=sflag, size = 0x8, scoped, tag = 'scoped memory for tpu_custom_call.1']
    %11 = vsyncpa [#allocation3], 0
    %s12 = scalar_lea.sflag [#allocation3], 1
    %13 = vsyncpa %s12, 0
    loop: start=0, step=1, limit=4
    $region2: #{tpu_custom_call.1} parent=1 // loop_pre_header
      _
    $region3: #{tpu_custom_call.1} parent=1 // loop_header
      %s15 = sphi 0, %s19
      %p16 = scmp.ge.s32.totalorder %s15, 4
      %s25 = sphi 0, %s27
      %s28 = sphi 0, %s25
      %s29 = sphi 0, %s28
      %s45 = sphi 0, %s29
      %s49 = sphi 0, %s49
      %s51 = sphi 0, %s49
      %s52 = sphi 0, %s51
      %s66 = sphi 0, %s52
      %s70 = sphi 0, %s70
      %s72 = sphi 0, %s70
      %s73 = sphi 0, %s72
      %s87 = sphi 0, %s73
      %s91 = sphi 0, %s91
      %s93 = sphi 0, %s91
      %s94 = sphi 0, %s93
      %s108 = sphi 0, %s94
      %s112 = sphi 0, %s112
      %s114 = sphi 0, %s112
      %s115 = sphi 0, %s114
      %s129 = sphi 0, %s115
      %s133 = sphi 0, %s133
      %s135 = sphi 0, %s133
      %s136 = sphi 0, %s135
      %s150 = sphi 0, %s136
      %s156 = sphi 0, %s158
      %s159 = sphi 0, %s156
      %s160 = sphi 0, %s159
      %s176 = sphi 0, %s160
    $region4: #{tpu_custom_call.1} parent=1 // loop_header_branch
      %18 = sbr.rel (%p16) target = $region8
    $region5: #{tpu_custom_call.1} parent=1 // loop_body
      %s20 = ssub.s32 %s15, 1
      %s21 = ssub.s32 %s15, 2
      %s22 = sadd.s32 %s15, 1
      %s23 = ssub.s32 %s15, %s22
      %p24 = scmp.eq.s32.totalorder %s23, 0
      %s26 = sadd.s32 %s25, 1
      %s27 = scalar_select %p24, %s25, %s26
      %p30 = pneg %p24
      %p31 = scmp.eq.s32.totalorder %s15, 1
      %p32 = por %p30, %p31
      %p33 = scmp.ne.s32.totalorder %s25, %s28
      %p34 = scmp.eq.s32.totalorder %s15, 0
      %p35 = por %p33, %p34
      %p36 = scmp.ne.s32.totalorder %s25, %s28
      %p37 = scmp.eq.s32.totalorder %s20, 1
      %p38 = por %p36, %p37
      %p39 = scmp.ne.s32.totalorder %s28, %s29
      %p40 = scmp.eq.s32.totalorder %s20, 0
      %p41 = por %p39, %p40
      %p42 = scmp.ne.s32.totalorder %s28, %s29
      %p43 = scmp.eq.s32.totalorder %s21, 1
      %p44 = por %p42, %p43
      %p46 = scmp.ne.s32.totalorder %s29, %s45
      %p47 = scmp.eq.s32.totalorder %s21, 0
      %p48 = por %p46, %p47
      %s50 = sadd.s32 %s49, 1
      %p53 = scmp.eq.s32.totalorder %s15, 1
      %p54 = scmp.ne.s32.totalorder %s49, %s51
      %p55 = scmp.eq.s32.totalorder %s15, 0
      %p56 = por %p54, %p55
      %p57 = scmp.ne.s32.totalorder %s49, %s51
      %p58 = scmp.eq.s32.totalorder %s20, 1
      %p59 = por %p57, %p58
      %p60 = scmp.ne.s32.totalorder %s51, %s52
      %p61 = scmp.eq.s32.totalorder %s20, 0
      %p62 = por %p60, %p61
      %p63 = scmp.ne.s32.totalorder %s51, %s52
      %p64 = scmp.eq.s32.totalorder %s21, 1
      %p65 = por %p63, %p64
      %p67 = scmp.ne.s32.totalorder %s52, %s66
      %p68 = scmp.eq.s32.totalorder %s21, 0
      %p69 = por %p67, %p68
      %s71 = sadd.s32 %s70, 1
      %p74 = scmp.eq.s32.totalorder %s15, 1
      %p75 = scmp.ne.s32.totalorder %s70, %s72
      %p76 = scmp.eq.s32.totalorder %s15, 0
      %p77 = por %p75, %p76
      %p78 = scmp.ne.s32.totalorder %s70, %s72
      %p79 = scmp.eq.s32.totalorder %s20, 1
      %p80 = por %p78, %p79
      %p81 = scmp.ne.s32.totalorder %s72, %s73
      %p82 = scmp.eq.s32.totalorder %s20, 0
      %p83 = por %p81, %p82
      %p84 = scmp.ne.s32.totalorder %s72, %s73
      %p85 = scmp.eq.s32.totalorder %s21, 1
      %p86 = por %p84, %p85
      %p88 = scmp.ne.s32.totalorder %s73, %s87
      %p89 = scmp.eq.s32.totalorder %s21, 0
      %p90 = por %p88, %p89
      %s92 = sadd.s32 %s91, 1
      %p95 = scmp.eq.s32.totalorder %s15, 1
      %p96 = scmp.ne.s32.totalorder %s91, %s93
      %p97 = scmp.eq.s32.totalorder %s15, 0
      %p98 = por %p96, %p97
      %p99 = scmp.ne.s32.totalorder %s91, %s93
      %p100 = scmp.eq.s32.totalorder %s20, 1
      %p101 = por %p99, %p100
      %p102 = scmp.ne.s32.totalorder %s93, %s94
      %p103 = scmp.eq.s32.totalorder %s20, 0
      %p104 = por %p102, %p103
      %p105 = scmp.ne.s32.totalorder %s93, %s94
      %p106 = scmp.eq.s32.totalorder %s21, 1
      %p107 = por %p105, %p106
      %p109 = scmp.ne.s32.totalorder %s94, %s108
      %p110 = scmp.eq.s32.totalorder %s21, 0
      %p111 = por %p109, %p110
      %s113 = sadd.s32 %s112, 1
      %p116 = scmp.eq.s32.totalorder %s15, 1
      %p117 = scmp.ne.s32.totalorder %s112, %s114
      %p118 = scmp.eq.s32.totalorder %s15, 0
      %p119 = por %p117, %p118
      %p120 = scmp.ne.s32.totalorder %s112, %s114
      %p121 = scmp.eq.s32.totalorder %s20, 1
      %p122 = por %p120, %p121
      %p123 = scmp.ne.s32.totalorder %s114, %s115
      %p124 = scmp.eq.s32.totalorder %s20, 0
      %p125 = por %p123, %p124
      %p126 = scmp.ne.s32.totalorder %s114, %s115
      %p127 = scmp.eq.s32.totalorder %s21, 1
      %p128 = por %p126, %p127
      %p130 = scmp.ne.s32.totalorder %s115, %s129
      %p131 = scmp.eq.s32.totalorder %s21, 0
      %p132 = por %p130, %p131
      %s134 = sadd.s32 %s133, 1
      %p137 = scmp.eq.s32.totalorder %s15, 1
      %p138 = scmp.ne.s32.totalorder %s133, %s135
      %p139 = scmp.eq.s32.totalorder %s15, 0
      %p140 = por %p138, %p139
      %p141 = scmp.ne.s32.totalorder %s133, %s135
      %p142 = scmp.eq.s32.totalorder %s20, 1
      %p143 = por %p141, %p142
      %p144 = scmp.ne.s32.totalorder %s135, %s136
      %p145 = scmp.eq.s32.totalorder %s20, 0
      %p146 = por %p144, %p145
      %p147 = scmp.ne.s32.totalorder %s135, %s136
      %p148 = scmp.eq.s32.totalorder %s21, 1
      %p149 = por %p147, %p148
      %p151 = scmp.ne.s32.totalorder %s136, %s150
      %p152 = scmp.eq.s32.totalorder %s21, 0
      %p153 = por %p151, %p152
      %s154 = ssub.s32 %s15, %s22
      %p155 = scmp.eq.s32.totalorder %s154, 0
      %s157 = sadd.s32 %s156, 1
      %s158 = scalar_select %p155, %s156, %s157
      %p161 = pneg %p155
      %p162 = scmp.eq.s32.totalorder %s15, 1
      %p163 = por %p161, %p162
      %p164 = scmp.ne.s32.totalorder %s156, %s159
      %p165 = scmp.eq.s32.totalorder %s15, 0
      %p166 = por %p164, %p165
      %p167 = scmp.ne.s32.totalorder %s156, %s159
      %p168 = scmp.eq.s32.totalorder %s20, 1
      %p169 = por %p167, %p168
      %p170 = scmp.ne.s32.totalorder %s159, %s160
      %p171 = scmp.eq.s32.totalorder %s20, 0
      %p172 = por %p170, %p171
      %p173 = scmp.ne.s32.totalorder %s159, %s160
      %p174 = scmp.eq.s32.totalorder %s21, 1
      %p175 = por %p173, %p174
      %p177 = scmp.ne.s32.totalorder %s160, %s176
      %p178 = scmp.eq.s32.totalorder %s21, 0
      %p179 = por %p177, %p178
      %p180 = scmp.le.s32.totalorder 1, %s15
      %p181 = scmp.lt.s32.totalorder %s15, 3
      %p182 = pnand %p180, %p181
      %p183 = pneg %p182
      // Predicated region
      $region9: #{tpu_custom_call.1} parent=5 // pred_check
        _
      $region10: #{tpu_custom_call.1} parent=5 // pred_check_branch
        %185 = sbr.rel (%p182) target = $region12
      $region11: #{tpu_custom_call.1} parent=5 // pred_region
        %s186 = ssub.s32 %s15, 1
        // Predicated region
        $region13: #{tpu_custom_call.1} parent=11 // pred_check
          %p187 = pneg %p62
        $region14: #{tpu_custom_call.1} parent=11 // pred_check_branch
          %189 = sbr.rel (%p187) target = $region16
        $region15: #{tpu_custom_call.1} parent=11 // pred_region
          _
        $region16: #{tpu_custom_call.1} parent=11 // pred_fallthru
          _
        // Predicated region
        $region17: #{tpu_custom_call.1} parent=11 // pred_check
          %p190 = pneg %p83
        $region18: #{tpu_custom_call.1} parent=11 // pred_check_branch
          %192 = sbr.rel (%p190) target = $region20
        $region19: #{tpu_custom_call.1} parent=11 // pred_region
          _
        $region20: #{tpu_custom_call.1} parent=11 // pred_fallthru
          _
        // Predicated region
        $region21: #{tpu_custom_call.1} parent=11 // pred_check
          %p193 = pneg %p104
        $region22: #{tpu_custom_call.1} parent=11 // pred_check_branch
          %195 = sbr.rel (%p193) target = $region24
        $region23: #{tpu_custom_call.1} parent=11 // pred_region
          _
        $region24: #{tpu_custom_call.1} parent=11 // pred_fallthru
          _
        // Predicated region
        $region25: #{tpu_custom_call.1} parent=11 // pred_check
          %p196 = pneg %p125
        $region26: #{tpu_custom_call.1} parent=11 // pred_check_branch
          %198 = sbr.rel (%p196) target = $region28
        $region27: #{tpu_custom_call.1} parent=11 // pred_region
          _
        $region28: #{tpu_custom_call.1} parent=11 // pred_fallthru
          _
        // Predicated region
        $region29: #{tpu_custom_call.1} parent=11 // pred_check
          %p199 = pneg %p146
        $region30: #{tpu_custom_call.1} parent=11 // pred_check_branch
          %201 = sbr.rel (%p199) target = $region32
        $region31: #{tpu_custom_call.1} parent=11 // pred_region
          _
        $region32: #{tpu_custom_call.1} parent=11 // pred_fallthru
          _
      $region12: #{tpu_custom_call.1} parent=5 // pred_fallthru
        _
      %p202 = scmp.lt.s32.totalorder %s15, 2
      // Predicated region
      $region33: #{tpu_custom_call.1} parent=5 // pred_check
        %p203 = pneg %p202
      $region34: #{tpu_custom_call.1} parent=5 // pred_check_branch
        %205 = sbr.rel (%p203) target = $region36
      $region35: #{tpu_custom_call.1} parent=5 // pred_region
        // Predicated region
        $region37: #{tpu_custom_call.1} parent=35 // pred_check
          %p206 = pneg %p35
        $region38: #{tpu_custom_call.1} parent=35 // pred_check_branch
          %208 = sbr.rel (%p206) target = $region40
        $region39: #{tpu_custom_call.1} parent=35 // pred_region
          %p209 = scmp.lt.s32.totalorder %s15, 1
          %s210 = scalar_select %p209, %s15, 1
          %s211 = smul.addr %s210, 8
          %s212 = scalar_lea.vmem %s0, %s211
        $region40: #{tpu_custom_call.1} parent=35 // pred_fallthru
          _
      $region36: #{tpu_custom_call.1} parent=5 // pred_fallthru
        _
      %p213 = scmp.le.s32.totalorder 1, %s15
      %p214 = scmp.lt.s32.totalorder %s15, 3
      %p215 = pnand %p213, %p214
      %p216 = pneg %p215
      // Predicated region
      $region41: #{tpu_custom_call.1} parent=5 // pred_check
        _
      $region42: #{tpu_custom_call.1} parent=5 // pred_check_branch
        %218 = sbr.rel (%p215) target = $region44
      $region43: #{tpu_custom_call.1} parent=5 // pred_region
        %s219 = ssub.s32 %s15, 1
        %p220 = scmp.lt.s32.totalorder %s20, 1
        %s221 = scalar_select %p220, %s20, 1
        %s222 = smul.addr %s221, 8
        %s223 = scalar_lea.vmem %s0, %s222
        %p224 = pneg %p41
        %p225 = pneg %p38
        %p226 = pneg %p62
        %p227 = pneg %p59
        %p228 = pneg %p83
        %p229 = pneg %p80
        %p230 = pneg %p104
        %p231 = pneg %p101
        %p232 = pneg %p125
        %p233 = pneg %p122
        %p234 = pneg %p146
        %p235 = pneg %p143
        %p236 = pneg %p172
        %p237 = pneg %p169
        %s238 = sand.u32 %s159, 1
        %s239 = scalar_lea.sflag [#allocation3], %s238
        %s240 = sand.u32 %s159, 1
        %s241 = smul.addr %s240, 8
        %s242 = scalar_lea.vmem [#allocation2], %s241
        %p243 = scmp.lt.s32.totalorder %s20, 1
        %s244 = scalar_select %p243, %s20, 1
        %s245 = smul.addr %s244, 8
        %s246 = scalar_lea.vmem %s0, %s245
        %v247 = vld [vmem:[%s246] sm:$0xff]
        %v248 = vld [vmem:[%s4] sm:$0xff]
        %vm249 = vcmask 261120
        %v250 = vsel %vm249, %v247, 0.0
        %v251 = vrot.slane %v250, 4
        %v252 = vadd.f32 %v250, %v251
        %v253 = vrot.slane %v252, 2
        %v254 = vadd.f32 %v252, %v253
        %v255 = vrot.slane %v254, 1
        %v256 = vadd.f32 %v254, %v255
        %v257 = vld [vmem:[%s1] sm:$0xff]
        %v258 = vld [vmem:[%s1 + $0x8] sm:$0xff]
        %v259 = vld [vmem:[%s1 + $0x10] sm:$0xff]
        %v260 = vld [vmem:[%s1 + $0x18] sm:$0xff]
        %v262 = vsel %vm249, %v256, 0
        %264 = vmatprep.subr.mxu0 0.0
        %265 = vmatpush1.msra.mxu0 %v257
        %266 = vmatprep.subr.mxu0 0.0
        %267 = vmatpush1.msra.mxu0 %v258
        %268 = vmatprep.subr.mxu0 0.0
        %269 = vmatpush1.msra.mxu0 %v259
        %270 = vmatprep.subr.mxu0 0.0
        %271 = vmatpush1.msra.mxu0 %v260
        %272 = vmatprep.subr.mxu0 0.0
        %273 = vmatpush1.msra.mxu0 0.0
        %274 = vmatprep.subr.mxu0 0.0
        %275 = vmatpush1.msra.mxu0 0.0
        %276 = vmatprep.subr.mxu0 0.0
        %277 = vmatpush1.msra.mxu0 0.0
        %278 = vmatprep.subr.mxu0 0.0
        %279 = vmatpush1.msra.mxu0 0.0
        %280 = vmatprep.subr.mxu0 0.0
        %281 = vmatpush1.msra.mxu0 0.0
        %282 = vmatprep.subr.mxu0 0.0
        %283 = vmatpush1.msra.mxu0 0.0
        %284 = vmatprep.subr.mxu0 0.0
        %285 = vmatpush1.msra.mxu0 0.0
        %286 = vmatprep.subr.mxu0 0.0
        %287 = vmatpush1.msra.mxu0 0.0
        %288 = vmatprep.subr.mxu0 0.0
        %289 = vmatpush1.msra.mxu0 0.0
        %290 = vmatprep.subr.mxu0 0.0
        %291 = vmatpush1.msra.mxu0 0.0
        %292 = vmatprep.subr.mxu0 0.0
        %293 = vmatpush1.msra.mxu0 0.0
        %294 = vmatprep.subr.mxu0 0.0
        %295 = vmatpush1.msra.mxu0 0.0
        %296 = vmatprep.subr.mxu0 0.0
        %297 = vmatpush1.msra.mxu0 0.0
        %298 = vmatprep.subr.mxu0 0.0
        %299 = vmatpush1.msra.mxu0 0.0
        %300 = vmatprep.subr.mxu0 0.0
        %301 = vmatpush1.msra.mxu0 0.0
        %302 = vmatprep.subr.mxu0 0.0
        %303 = vmatpush1.msra.mxu0 0.0
        %304 = vmatprep.subr.mxu0 0.0
        %305 = vmatpush1.msra.mxu0 0.0
        %306 = vmatprep.subr.mxu0 0.0
        %307 = vmatpush1.msra.mxu0 0.0
        %308 = vmatprep.subr.mxu0 0.0
        %309 = vmatpush1.msra.mxu0 0.0
        %310 = vmatprep.subr.mxu0 0.0
        %311 = vmatpush1.msra.mxu0 0.0
        %312 = vmatprep.subr.mxu0 0.0
        %313 = vmatpush1.msra.mxu0 0.0
        %314 = vmatprep.subr.mxu0 0.0
        %315 = vmatpush1.msra.mxu0 0.0
        %316 = vmatprep.subr.mxu0 0.0
        %317 = vmatpush1.msra.mxu0 0.0
        %318 = vmatprep.subr.mxu0 0.0
        %319 = vmatpush1.msra.mxu0 0.0
        %320 = vmatprep.subr.mxu0 0.0
        %321 = vmatpush1.msra.mxu0 0.0
        %322 = vmatprep.subr.mxu0 0.0
        %323 = vmatpush1.msra.mxu0 0.0
        %324 = vmatprep.subr.mxu0 0.0
        %325 = vmatpush1.msra.mxu0 0.0
        %326 = vmatprep.subr.mxu0 0.0
        %327 = vmatpush1.msra.mxu0 0.0
        %328 = vmatprep.mubr.f32.mxu0 0.0
        %329 = vmatmul.mubr.f32.gmra.mrb[0].mxu0 %v262
        %v330 = vpop.f32.mrb[0].mxu0
        %v331 = vadd.f32 %v248, %v330
        %v332 = vpop.f32.mrb[0].mxu0
        %333 = vdwg.mxu0
        %v334 = vlaneseq
        %v335 = vshrl.u32 %v334, 7
        %v336 = vsub.s32 0, %v335
        %v337 = vrot.slane %v331, %v336
        %v338 = vadd.f32 %v247, %v337
        %v339 = vsel %vm249, %v338, 0.0
        %340 = vadd.xlane.f32.xlu0 %v339
        %v341 = vpop.xlane.xlu0 %340
        %v342 = vrcp.pop 32.0
        %v343 = vmul.f32 %v341, %v342
        %v344 = vmul.f32 %v338, %v338
        %v345 = vsel %vm249, %v344, 0.0
        %346 = vadd.xlane.f32.xlu0 %v345
        %v347 = vpop.xlane.xlu0 %346
        %v348 = vmul.f32 %v347, %v342
        %v349 = vmul.f32 %v343, %v343
        %v350 = vsub.f32 %v348, %v349
        %v351 = vsub.f32 %v338, %v343
        %v352 = vadd.f32 %v350, 1e-05
        %v353 = vrsqrt.pop %v352
        %v354 = vmul.f32 %v351, %v353
        %v355 = vlaneseq
        %v356 = vshrl.u32 %v355, 7
        %v357 = vsub.s32 1, %v356
        %v358 = vrot.slane %v248, %v357
        %v359 = vmul.f32 %v354, %v358
        %v360 = vlaneseq
        %v361 = vshrl.u32 %v360, 7
        %v362 = vsub.s32 2, %v361
        %v363 = vrot.slane %v248, %v362
        %v364 = vadd.f32 %v359, %v363
        %v365 = vld [vmem:[%s2] sm:$0xff]
        %v366 = vld [vmem:[%s2 + $0x8] sm:$0xff]
        %v367 = vld [vmem:[%s2 + $0x10] sm:$0xff]
        %v368 = vld [vmem:[%s2 + $0x18] sm:$0xff]
        %v369 = vld [vmem:[%s5] sm:$0x1]
        %v371 = vlaneseq
        %v372 = vshrl.u32 %v371, 7
        %v373 = vsub.s32 0, %v372
        %v374 = vrot.slane %v369, %v373
        %v377 = vsel %vm249, %v364, 0
        %379 = vmatprep.subr.mxu0 0.0
        %380 = vmatpush1.msra.mxu0 %v365
        %381 = vmatprep.subr.mxu0 0.0
        %382 = vmatpush1.msra.mxu0 %v366
        %383 = vmatprep.subr.mxu0 0.0
        %384 = vmatpush1.msra.mxu0 %v367
        %385 = vmatprep.subr.mxu0 0.0
        %386 = vmatpush1.msra.mxu0 %v368
        %387 = vmatprep.subr.mxu0 0.0
        %388 = vmatpush1.msra.mxu0 0.0
        %389 = vmatprep.subr.mxu0 0.0
        %390 = vmatpush1.msra.mxu0 0.0
        %391 = vmatprep.subr.mxu0 0.0
        %392 = vmatpush1.msra.mxu0 0.0
        %393 = vmatprep.subr.mxu0 0.0
        %394 = vmatpush1.msra.mxu0 0.0
        %395 = vmatprep.subr.mxu0 0.0
        %396 = vmatpush1.msra.mxu0 0.0
        %397 = vmatprep.subr.mxu0 0.0
        %398 = vmatpush1.msra.mxu0 0.0
        %399 = vmatprep.subr.mxu0 0.0
        %400 = vmatpush1.msra.mxu0 0.0
        %401 = vmatprep.subr.mxu0 0.0
        %402 = vmatpush1.msra.mxu0 0.0
        %403 = vmatprep.subr.mxu0 0.0
        %404 = vmatpush1.msra.mxu0 0.0
        %405 = vmatprep.subr.mxu0 0.0
        %406 = vmatpush1.msra.mxu0 0.0
        %407 = vmatprep.subr.mxu0 0.0
        %408 = vmatpush1.msra.mxu0 0.0
        %409 = vmatprep.subr.mxu0 0.0
        %410 = vmatpush1.msra.mxu0 0.0
        %411 = vmatprep.subr.mxu0 0.0
        %412 = vmatpush1.msra.mxu0 0.0
        %413 = vmatprep.subr.mxu0 0.0
        %414 = vmatpush1.msra.mxu0 0.0
        %415 = vmatprep.subr.mxu0 0.0
        %416 = vmatpush1.msra.mxu0 0.0
        %417 = vmatprep.subr.mxu0 0.0
        %418 = vmatpush1.msra.mxu0 0.0
        %419 = vmatprep.subr.mxu0 0.0
        %420 = vmatpush1.msra.mxu0 0.0
        %421 = vmatprep.subr.mxu0 0.0
        %422 = vmatpush1.msra.mxu0 0.0
        %423 = vmatprep.subr.mxu0 0.0
        %424 = vmatpush1.msra.mxu0 0.0
        %425 = vmatprep.subr.mxu0 0.0
        %426 = vmatpush1.msra.mxu0 0.0
        %427 = vmatprep.subr.mxu0 0.0
        %428 = vmatpush1.msra.mxu0 0.0
        %429 = vmatprep.subr.mxu0 0.0
        %430 = vmatpush1.msra.mxu0 0.0
        %431 = vmatprep.subr.mxu0 0.0
        %432 = vmatpush1.msra.mxu0 0.0
        %433 = vmatprep.subr.mxu0 0.0
        %434 = vmatpush1.msra.mxu0 0.0
        %435 = vmatprep.subr.mxu0 0.0
        %436 = vmatpush1.msra.mxu0 0.0
        %437 = vmatprep.subr.mxu0 0.0
        %438 = vmatpush1.msra.mxu0 0.0
        %439 = vmatprep.subr.mxu0 0.0
        %440 = vmatpush1.msra.mxu0 0.0
        %441 = vmatprep.subr.mxu0 0.0
        %442 = vmatpush1.msra.mxu0 0.0
        %443 = vmatprep.mubr.f32.mxu0 0.0
        %444 = vmatmul.mubr.f32.gmra.mrb[0].mxu0 %v377
        %v445 = vpop.f32.mrb[0].mxu0
        %v446 = vadd.f32 %v374, %v445
        %v447 = vpop.f32.mrb[0].mxu0
        %448 = vdwg.mxu0
        %v449 = vmax.f32 %v446, 0.0
        %v450 = vld [vmem:[%s3] sm:$0xff]
        %v451 = vld [vmem:[%s3 + $0x8] sm:$0xff]
        %v452 = vld [vmem:[%s3 + $0x10] sm:$0xff]
        %v453 = vld [vmem:[%s3 + $0x18] sm:$0xff]
        %v454 = vld [vmem:[%s3 + $0x20] sm:$0xff]
        %v455 = vld [vmem:[%s3 + $0x28] sm:$0xff]
        %v456 = vld [vmem:[%s3 + $0x30] sm:$0xff]
        %v457 = vld [vmem:[%s3 + $0x38] sm:$0xff]
        %v458 = vlaneseq
        %v459 = vshrl.u32 %v458, 7
        %v460 = vsub.s32 5, %v459
        %v461 = vrot.slane %v248, %v460
        %vm462 = vcmask 523264
        %v464 = vsel %vm462, %v449, 0
        %466 = vmatprep.subr.mxu0 0.0
        %467 = vmatpush1.msra.mxu0 %v450
        %468 = vmatprep.subr.mxu0 0.0
        %469 = vmatpush1.msra.mxu0 %v451
        %470 = vmatprep.subr.mxu0 0.0
        %471 = vmatpush1.msra.mxu0 %v452
        %472 = vmatprep.subr.mxu0 0.0
        %473 = vmatpush1.msra.mxu0 %v453
        %474 = vmatprep.subr.mxu0 0.0
        %475 = vmatpush1.msra.mxu0 %v454
        %476 = vmatprep.subr.mxu0 0.0
        %477 = vmatpush1.msra.mxu0 %v455
        %478 = vmatprep.subr.mxu0 0.0
        %479 = vmatpush1.msra.mxu0 %v456
        %480 = vmatprep.subr.mxu0 0.0
        %481 = vmatpush1.msra.mxu0 %v457
        %482 = vmatprep.subr.mxu0 0.0
        %483 = vmatpush1.msra.mxu0 0.0
        %484 = vmatprep.subr.mxu0 0.0
        %485 = vmatpush1.msra.mxu0 0.0
        %486 = vmatprep.subr.mxu0 0.0
        %487 = vmatpush1.msra.mxu0 0.0
        %488 = vmatprep.subr.mxu0 0.0
        %489 = vmatpush1.msra.mxu0 0.0
        %490 = vmatprep.subr.mxu0 0.0
        %491 = vmatpush1.msra.mxu0 0.0
        %492 = vmatprep.subr.mxu0 0.0
        %493 = vmatpush1.msra.mxu0 0.0
        %494 = vmatprep.subr.mxu0 0.0
        %495 = vmatpush1.msra.mxu0 0.0
        %496 = vmatprep.subr.mxu0 0.0
        %497 = vmatpush1.msra.mxu0 0.0
        %498 = vmatprep.subr.mxu0 0.0
        %499 = vmatpush1.msra.mxu0 0.0
        %500 = vmatprep.subr.mxu0 0.0
        %501 = vmatpush1.msra.mxu0 0.0
        %502 = vmatprep.subr.mxu0 0.0
        %503 = vmatpush1.msra.mxu0 0.0
        %504 = vmatprep.subr.mxu0 0.0
        %505 = vmatpush1.msra.mxu0 0.0
        %506 = vmatprep.subr.mxu0 0.0
        %507 = vmatpush1.msra.mxu0 0.0
        %508 = vmatprep.subr.mxu0 0.0
        %509 = vmatpush1.msra.mxu0 0.0
        %510 = vmatprep.subr.mxu0 0.0
        %511 = vmatpush1.msra.mxu0 0.0
        %512 = vmatprep.subr.mxu0 0.0
        %513 = vmatpush1.msra.mxu0 0.0
        %514 = vmatprep.subr.mxu0 0.0
        %515 = vmatpush1.msra.mxu0 0.0
        %516 = vmatprep.subr.mxu0 0.0
        %517 = vmatpush1.msra.mxu0 0.0
        %518 = vmatprep.subr.mxu0 0.0
        %519 = vmatpush1.msra.mxu0 0.0
        %520 = vmatprep.subr.mxu0 0.0
        %521 = vmatpush1.msra.mxu0 0.0
        %522 = vmatprep.subr.mxu0 0.0
        %523 = vmatpush1.msra.mxu0 0.0
        %524 = vmatprep.subr.mxu0 0.0
        %525 = vmatpush1.msra.mxu0 0.0
        %526 = vmatprep.subr.mxu0 0.0
        %527 = vmatpush1.msra.mxu0 0.0
        %528 = vmatprep.subr.mxu0 0.0
        %529 = vmatpush1.msra.mxu0 0.0
        %530 = vmatprep.mubr.f32.mxu0 0.0
        %531 = vmatmul.mubr.f32.gmra.mrb[0].mxu0 %v464
        %v532 = vpop.f32.mrb[0].mxu0
        %v533 = vadd.f32 %v461, %v532
        %v534 = vpop.f32.mrb[0].mxu0
        %535 = vdwg.mxu0
        %v536 = vadd.f32 %v533, %v364
        %v537 = vsel %vm249, %v536, 0.0
        %538 = vadd.xlane.f32.xlu0 %v537
        %v539 = vpop.xlane.xlu0 %538
        %v540 = vmul.f32 %v539, %v342
        %v541 = vmul.f32 %v536, %v536
        %v542 = vsel %vm249, %v541, 0.0
        %543 = vadd.xlane.f32.xlu0 %v542
        %v544 = vpop.xlane.xlu0 %543
        %v545 = vmul.f32 %v544, %v342
        %v546 = vmul.f32 %v540, %v540
        %v547 = vsub.f32 %v545, %v546
        %v548 = vsub.f32 %v536, %v540
        %v549 = vadd.f32 %v547, 1e-05
        %v550 = vrsqrt.pop %v549
        %v551 = vmul.f32 %v548, %v550
        %v552 = vlaneseq
        %v553 = vshrl.u32 %v552, 7
        %v554 = vsub.s32 3, %v553
        %v555 = vrot.slane %v248, %v554
        %v556 = vmul.f32 %v551, %v555
        %v557 = vlaneseq
        %v558 = vshrl.u32 %v557, 7
        %v559 = vsub.s32 4, %v558
        %v560 = vrot.slane %v248, %v559
        %v561 = vadd.f32 %v556, %v560
        %562 = vst.msk [vmem:[%s242] sm:$0xff] %vm249, %v561
        %s563 = sand.u32 %s159, 1
        %s564 = scalar_lea.sflag [#allocation3], %s563
        %s565 = sand.u32 %s159, 1
        %s566 = smul.addr %s565, 8
        %s567 = scalar_lea.vmem [#allocation2], %s566
        // Predicated region
        $region45: #{tpu_custom_call.1} parent=43 // pred_check
          %p568 = pneg %p169
        $region46: #{tpu_custom_call.1} parent=43 // pred_check_branch
          %570 = sbr.rel (%p568) target = $region48
        $region47: #{tpu_custom_call.1} parent=43 // pred_region
          %s572 = ssub.s32 128, 128
          %573 = vsyncadd %s564, %s572
          %s574 = smul.addr %s20, 128
          %s575 = scalar_lea.hbm %s6, %s574
          %s577 = sshll.u32 %s567, 4
          %s578 = int_to_ptr.vmem [resolvable:$true] %s577
          %580 = dma.vmem_to_hbm [thread:$0]  %s578, 128, %s575, %s564
        $region48: #{tpu_custom_call.1} parent=43 // pred_fallthru
          _
      $region44: #{tpu_custom_call.1} parent=5 // pred_fallthru
        _
      %p581 = scmp.le.s32.totalorder 2, %s15
      // Predicated region
      $region49: #{tpu_custom_call.1} parent=5 // pred_check
        %p582 = pneg %p581
      $region50: #{tpu_custom_call.1} parent=5 // pred_check_branch
        %584 = sbr.rel (%p582) target = $region52
      $region51: #{tpu_custom_call.1} parent=5 // pred_region
        %s585 = ssub.s32 %s15, 2
        // Predicated region
        $region53: #{tpu_custom_call.1} parent=51 // pred_check
          %p586 = pneg %p175
        $region54: #{tpu_custom_call.1} parent=51 // pred_check_branch
          %588 = sbr.rel (%p586) target = $region56
        $region55: #{tpu_custom_call.1} parent=51 // pred_region
          %s589 = sand.u32 %s160, 1
          %s590 = scalar_lea.sflag [#allocation3], %s589
          %s591 = sand.u32 %s160, 1
          %s592 = smul.addr %s591, 8
          %s593 = scalar_lea.vmem [#allocation2], %s592
          %594 = dma.done %s590, 128
        $region56: #{tpu_custom_call.1} parent=51 // pred_fallthru
          _
      $region52: #{tpu_custom_call.1} parent=5 // pred_fallthru
        _
    $region6: #{tpu_custom_call.1} parent=1 // loop_footer
      %s19 = sadd.s32 1, %s15
    $region7: #{tpu_custom_call.1} parent=1 // loop_footer_branch
      %14 = sbr.rel target = $region3
    $region8: #{tpu_custom_call.1} parent=1 // loop_exit
      _
    %595 = vsyncpa [#allocation3], 1
    %s596 = scalar_lea.sflag [#allocation3], 1
    %597 = vsyncpa %s596, 1

</llo_original>
